<compile_context>
chip_gen: v7x
topology: tpu7x:2x2x1
jax: 0.10.0
libtpu: 0.0.40
codegen_flags: <defaults>
</compile_context>

<pallas_src>
import jax
import jax.numpy as jnp
from jax.experimental import pallas as pl
from jax.experimental.pallas import tpu as pltpu


_TARGET_X_TILE_BYTES = 8 * 1024 * 1024    # per-tile x byte target
_VMEM_LIMIT_BYTES = 48 * 1024 * 1024      # safe on v7x (64 MiB/TC physical)
_BLOCK_VMEM_BUDGET = 40 * 1024 * 1024     # what double-buffered blocks may use


def _frozen_bn_kernel(x_ref, p_ref, o_ref):
    """o = x * scale + shift; per-row (scale, shift) packed in p[:, 0:2]."""
    p = p_ref[...]                       # (TR, 2) float32
    scale = p[:, 0:1]                    # (TR, 1) -> broadcast over lanes
    shift = p[:, 1:2]
    x = x_ref[...].astype(jnp.float32)
    o_ref[...] = (x * scale + shift).astype(o_ref.dtype)


def _divisors(n):
    out = set()
    i = 1
    while i * i <= n:
        if n % i == 0:
            out.add(i)
            out.add(n // i)
        i += 1
    return sorted(out)


def _sublane_multiple(itemsize):
    # f32 -> 8, bf16/f16 -> 16, int8/fp8 -> 32 (packed dtypes pack along
    # sublanes; aligned second-minor tiles keep loads/stores unmasked).
    return 8 * max(1, 4 // max(1, itemsize))


def _pick_lane_dim(hw, itemsize, sub, target_bytes):
    """Pick the lane dim L (a divisor of H*W) for the (R, L) slab."""
    cap = max(128, target_bytes // (sub * itemsize))
    divs = _divisors(hw)
    dense = [d for d in divs if d % 128 == 0 and d <= cap]
    if dense:
        return max(dense)                # lane-dense, unmasked stores
    fitting = [d for d in divs if d <= cap]
    return max(fitting)                  # always non-empty (1 divides hw)


def _pick_row_tile(n_rows, lanes, itemsize, sub):
    """Row-tile size: ~8 MiB of x per tile, VMEM-budget aware, >= 2 grid steps."""
    row_x = lanes * itemsize
    # Per row, across double buffers: x (2x) + out (2x) + packed params
    # ((TR, 2) f32 block pads lanes to 128 -> 512 B/row, 2 buffers).
    per_row_vmem = 4 * row_x + 2 * 512
    tr = min(_TARGET_X_TILE_BYTES // row_x, _BLOCK_VMEM_BUDGET // per_row_vmem)
    tr = max(sub, (tr // sub) * sub)
    tr = min(tr, n_rows)
    # Keep the grid splittable across v7x's two TensorCores (>= 2 steps).
    half = ((n_rows // 2) // sub) * sub
    if half >= sub:
        tr = min(tr, half)
    return int(tr)


def frozen_batch_norm_2d(x, weight, bias, running_mean, running_var, eps=1e-5):
    """FrozenBatchNorm2d forward (F.batch_norm with training=False).

    x: (N, C, H, W) array (NCHW, as in PyTorch).
    weight, bias, running_mean, running_var: (C,) arrays.
    """
    N, C, H, W = x.shape
    HW = H * W
    itemsize = jnp.dtype(x.dtype).itemsize
    sub = _sublane_multiple(itemsize)

    # Per-channel affine precomputed once in f32 (tiny (C,)-sized work).
    scale_c = weight.astype(jnp.float32) * jax.lax.rsqrt(
        running_var.astype(jnp.float32) + jnp.float32(eps))
    shift_c = bias.astype(jnp.float32) - running_mean.astype(jnp.float32) * scale_c

    # Copy-less NCHW reshape to (R, L): each row lies within one channel.
    L = _pick_lane_dim(HW, itemsize, sub, _TARGET_X_TILE_BYTES)
    S = HW // L
    R = N * C * S
    x2 = x.reshape(R, L)

    # Per-row (scale, shift) packed into one (R, 2) f32 array -> one small
    # side DMA per grid step instead of two.
    scale_r = jnp.broadcast_to(scale_c[None, :, None], (N, C, S)).reshape(R)
    shift_r = jnp.broadcast_to(shift_c[None, :, None], (N, C, S)).reshape(R)
    params = jnp.stack([scale_r, shift_r], axis=1)  # (R, 2) float32

    TR = _pick_row_tile(R, L, itemsize, sub)
    grid = (pl.cdiv(R, TR),)

    cost = pl.CostEstimate(
        flops=2 * R * L,                                   # one mul + one add / elem
        transcendentals=0,                                 # rsqrt hoisted to wrapper
        bytes_accessed=2 * R * L * itemsize + params.size * 4,
    )

    out2 = pl.pallas_call(
        _frozen_bn_kernel,
        out_shape=jax.ShapeDtypeStruct((R, L), x.dtype),
        grid=grid,
        in_specs=[
            pl.BlockSpec((TR, L), lambda i: (i, 0)),
            pl.BlockSpec((TR, 2), lambda i: (i, 0)),
        ],
        out_specs=pl.BlockSpec((TR, L), lambda i: (i, 0)),
        compiler_params=pltpu.CompilerParams(
            dimension_semantics=("parallel",),             # shard rows across TCs
            vmem_limit_bytes=_VMEM_LIMIT_BYTES,
        ),
        cost_estimate=cost,
    )(x2, params)

    return out2.reshape(N, C, H, W)


def _reference(x, weight, bias, running_mean, running_var, eps):
    scale = weight * jax.lax.rsqrt(running_var + eps)
    shift = bias - running_mean * scale
    C = weight.shape[0]
    x32 = x.astype(jnp.float32)
    return x32 * scale.reshape(1, C, 1, 1) + shift.reshape(1, C, 1, 1)


def _make_inputs(key, shape, dtype, eps):
    N, C, H, W = shape
    kx, kw, kb, km, kv = jax.random.split(key, 5)
    x = jax.random.normal(kx, (N, C, H, W), dtype=jnp.float32).astype(dtype)
    weight = 1.0 + 0.1 * jax.random.normal(kw, (C,), dtype=jnp.float32)
    bias = 0.1 * jax.random.normal(kb, (C,), dtype=jnp.float32)
    mean = 0.1 * jax.random.normal(km, (C,), dtype=jnp.float32)
    var = jnp.abs(1.0 + 0.1 * jax.random.normal(kv, (C,), dtype=jnp.float32)) - eps
    return x, weight, bias, mean, var


if __name__ == "__main__":
    key = jax.random.PRNGKey(0)
    eps = 1e-5

    # --- Test 1: lane dim multiple of 128 (H*W = 256) ----------------------
    k1, k2, k3, k4 = jax.random.split(key, 4)
    x, w, b, m, v = _make_inputs(k1, (2, 4, 16, 16), jnp.float32, eps)
    out = jax.block_until_ready(frozen_batch_norm_2d(x, w, b, m, v, eps=eps))
    ref = _reference(x, w, b, m, v, eps)
    assert out.shape == x.shape and out.dtype == x.dtype
    assert jnp.allclose(out.astype(jnp.float32), ref, atol=1e-5, rtol=1e-5)

    # --- Test 2: small spatial map (H*W = 16 < 128), no transpose path -----
    x, w, b, m, v = _make_inputs(k2, (1, 8, 4, 4), jnp.float32, eps)
    out = jax.block_until_ready(frozen_batch_norm_2d(x, w, b, m, v, eps=eps))
    ref = _reference(x, w, b, m, v, eps)
    assert out.shape == x.shape and out.dtype == x.dtype
    assert jnp.allclose(out.astype(jnp.float32), ref, atol=1e-5, rtol=1e-5)

    # --- Test 3: multi-step grid with a partial last row tile --------------
    x, w, b, m, v = _make_inputs(k3, (2, 100, 16, 16), jnp.float32, eps)
    out = jax.block_until_ready(frozen_batch_norm_2d(x, w, b, m, v, eps=eps))
    ref = _reference(x, w, b, m, v, eps)
    assert out.shape == x.shape and out.dtype == x.dtype
    assert jnp.allclose(out.astype(jnp.float32), ref, atol=1e-5, rtol=1e-5)

    # --- Test 4: bf16 input, non-multiple-of-128 lanes (H*W = 196) ---------
    x, w, b, m, v = _make_inputs(k4, (2, 3, 14, 14), jnp.bfloat16, eps)
    out = jax.block_until_ready(frozen_batch_norm_2d(x, w, b, m, v, eps=eps))
    ref = _reference(x, w, b, m, v, eps)
    assert out.shape == x.shape and out.dtype == x.dtype
    assert jnp.allclose(out.astype(jnp.float32), ref, atol=5e-2, rtol=5e-2)

    print("KERNEL_OK")
</pallas_src>

<mosaic_0001>
module attributes {stable_mosaic.version = 11 : i64} {
  func.func @_frozen_bn_kernel(%arg0: i32, %arg1: memref<8x256xf32, #tpu.memory_space<vmem>>, %arg2: memref<8x2xf32, #tpu.memory_space<vmem>>, %arg3: memref<8x256xf32, #tpu.memory_space<vmem>>) attributes {dimension_semantics = [#tpu.dimension_semantics<parallel>], iteration_bounds = array<i64: 1>, scalar_prefetch = 0 : i64, scratch_operands = 0 : i64, tpu.core_type = #tpu.core_type<tc>, window_params = [{transform_indices = @transform_0, window_bounds = array<i64: 8, 256>}, {transform_indices = @transform_1, window_bounds = array<i64: 8, 2>}, {transform_indices = @transform_2, window_bounds = array<i64: 8, 256>}]} {
    %c0 = arith.constant 0 : index
    %c0_0 = arith.constant 0 : index
    %0 = vector.load %arg2[%c0, %c0_0] : memref<8x2xf32, #tpu.memory_space<vmem>>, vector<8x2xf32>
    %1 = vector.extract_strided_slice %0 {offsets = [0, 0], sizes = [8, 1], strides = [1, 1]} : vector<8x2xf32> to vector<8x1xf32>
    %2 = vector.extract_strided_slice %0 {offsets = [0, 1], sizes = [8, 1], strides = [1, 1]} : vector<8x2xf32> to vector<8x1xf32>
    %c0_1 = arith.constant 0 : index
    %c0_2 = arith.constant 0 : index
    %3 = vector.load %arg1[%c0_1, %c0_2] : memref<8x256xf32, #tpu.memory_space<vmem>>, vector<8x256xf32>
    %4 = vector.broadcast %1 : vector<8x1xf32> to vector<8x256xf32>
    %5 = arith.mulf %3, %4 : vector<8x256xf32>
    %6 = vector.broadcast %2 : vector<8x1xf32> to vector<8x256xf32>
    %7 = arith.addf %5, %6 : vector<8x256xf32>
    %c0_3 = arith.constant 0 : index
    %c0_4 = arith.constant 0 : index
    %8 = vector.load %arg3[%c0_3, %c0_4] : memref<8x256xf32, #tpu.memory_space<vmem>>, vector<8x256xf32>
    tpu.vector_store %arg3[%c0_3, %c0_4], %7 {strides = array<i32>} : memref<8x256xf32, #tpu.memory_space<vmem>>, vector<8x256xf32>,
    return
  }
  func.func @transform_0(%arg0: i32) -> (i32, i32) {
    %c0_i32 = arith.constant 0 : i32
    %c0_i32_0 = arith.constant 0 : i32
    return %arg0, %c0_i32 : i32, i32
  }
  func.func @transform_1(%arg0: i32) -> (i32, i32) {
    %c0_i32 = arith.constant 0 : i32
    %c0_i32_0 = arith.constant 0 : i32
    return %arg0, %c0_i32 : i32, i32
  }
  func.func @transform_2(%arg0: i32) -> (i32, i32) {
    %c0_i32 = arith.constant 0 : i32
    %c0_i32_0 = arith.constant 0 : i32
    return %arg0, %c0_i32 : i32, i32
  }
}

</mosaic_0001>

<llo_original>
// kernel: tpu_custom_call.1
$region0: #{tpu_custom_call.1}
  #allocation0 [shape = 'u32[]', space=smem, size = 0x4, offset = 0x4, fixed_abs, tag = 'smem constant byte address 0x4 - core index']
  #allocation1 [shape = 'u32[144,128]{1,0:T(1,128)}', space=vmem, size = 0x12000, scoped, tag = 'internal scratch']
  %s0 = inlined_call_operand.hbm [shape: f32[8,256], index: 0, kind: input, shape index: {}]
  %s1 = inlined_call_operand.vmem [shape: f32[8,2], index: 1, kind: input, shape index: {}]
  %s2 = inlined_call_operand.hbm [shape: f32[8,256], index: 2, kind: output, shape index: {}]
  %s3 = sld [smem:[#allocation0]]
  $region22: #{tpu_custom_call.1} parent=0
    _
  %s5 = ssub.s32 1, %s3
  %s6 = scalar_select 0, %s5, %s3
  $region1: #{tpu_custom_call.1} parent=0
    #allocation2 [shape = 'u8[8192]{0}', space=vmem, size = 0x2000, scoped, tag = 'input window, operand 0, single buffered']
    #allocation3 [shape = 's32[1]{0}', space=sflag, size = 0x4, scoped, tag = 'scoped memory for tpu_custom_call.1']
    #allocation4 [shape = 's32[1]{0}', space=sflag, size = 0x4, scoped, tag = 'scoped memory for tpu_custom_call.1']
    #allocation5 [shape = 'u8[8192]{0}', space=vmem, size = 0x2000, scoped, tag = 'output window, operand 0, single buffered']
    %7 = vsyncpa [#allocation3], 0
    %8 = vsyncpa [#allocation4], 0
    // Predicated region
    $region2: #{tpu_custom_call.1} parent=1 // pred_check
      _
    $region3: #{tpu_custom_call.1} parent=1 // pred_check_branch
      %10 = sbr.rel (0) target = $region5
    $region4: #{tpu_custom_call.1} parent=1 // pred_region
      %s12 = ssub.s32 256, 256
      %13 = vsyncadd [#allocation3], %s12
      %s15 = sshll.u32 [#allocation2], 4
      %s16 = int_to_ptr.vmem [resolvable:$true] %s15
      %18 = dma.hbm_to_vmem [thread:$0]  %s0, 256, %s16, [#allocation3]
    $region5: #{tpu_custom_call.1} parent=1 // pred_fallthru
      _
    // Predicated region
    $region6: #{tpu_custom_call.1} parent=1 // pred_check
      _
    $region7: #{tpu_custom_call.1} parent=1 // pred_check_branch
      %20 = sbr.rel (0) target = $region9
    $region8: #{tpu_custom_call.1} parent=1 // pred_region
      _
    $region9: #{tpu_custom_call.1} parent=1 // pred_fallthru
      _
    // Predicated region
    $region10: #{tpu_custom_call.1} parent=1 // pred_check
      _
    $region11: #{tpu_custom_call.1} parent=1 // pred_check_branch
      %22 = sbr.rel (0) target = $region13
    $region12: #{tpu_custom_call.1} parent=1 // pred_region
      %23 = dma.done [#allocation3], 256
    $region13: #{tpu_custom_call.1} parent=1 // pred_fallthru
      _
    %v24 = vld [vmem:[%s1] sm:$0xff]
    %v25 = vld [vmem:[#allocation2] sm:$0xff]
    %v26 = vld [vmem:[#allocation2 + $0x8] sm:$0xff]
    %28 = vset.pattern.permute.xlu0 0
    %29 = vperm.xlu0 %28, %v24
    %v30 = vpop.permute.xlu0 %29
    %v32 = vmul.f32 %v25, %v30
    %v33 = vmul.f32 %v26, %v30
    %34 = vset.pattern.permute.xlu0 1
    %35 = vperm.xlu0 %34, %v24
    %v36 = vpop.permute.xlu0 %35
    %v38 = vadd.f32 %v32, %v36
    %v39 = vadd.f32 %v33, %v36
    %40 = vst [vmem:[#allocation5] sm:$0xff] %v38
    %41 = vst [vmem:[#allocation5 + $0x8] sm:$0xff] %v39
    // Predicated region
    $region14: #{tpu_custom_call.1} parent=1 // pred_check
      _
    $region15: #{tpu_custom_call.1} parent=1 // pred_check_branch
      %43 = sbr.rel (0) target = $region17
    $region16: #{tpu_custom_call.1} parent=1 // pred_region
      %s45 = ssub.s32 256, 256
      %46 = vsyncadd [#allocation4], %s45
      %s48 = sshll.u32 [#allocation5], 4
      %s49 = int_to_ptr.vmem [resolvable:$true] %s48
      %51 = dma.vmem_to_hbm [thread:$0]  %s49, 256, %s2, [#allocation4]
    $region17: #{tpu_custom_call.1} parent=1 // pred_fallthru
      _
    // Predicated region
    $region18: #{tpu_custom_call.1} parent=1 // pred_check
      _
    $region19: #{tpu_custom_call.1} parent=1 // pred_check_branch
      %53 = sbr.rel (0) target = $region21
    $region20: #{tpu_custom_call.1} parent=1 // pred_region
      %54 = dma.done [#allocation4], 256
    $region21: #{tpu_custom_call.1} parent=1 // pred_fallthru
      _
    %55 = vsyncpa [#allocation3], 1
    %56 = vsyncpa [#allocation4], 1

</llo_original>
